<compile_context>
chip_gen: v6e
topology: v6e:2x2x1
jax: 0.10.0
libtpu: 0.0.40
codegen_flags: <defaults>
</compile_context>

<pallas_src>
import jax
import jax.numpy as jnp
from jax.experimental import pallas as pl
from jax.experimental.pallas import tpu as pltpu


def mf_score_kernel(uvec_ref, ivec_ref, out_ref):
    # uvec_ref / ivec_ref : [block_b, F+2]  (batch on sublanes, features on lanes)
    # out_ref             : [block_b, 1]    float32
    u = uvec_ref[...].astype(jnp.float32)      # upcast before the multiply (v5e-safe)
    v = ivec_ref[...].astype(jnp.float32)
    ips = jnp.sum(u * v, axis=-1, keepdims=True)   # f32 accumulation over features
    out_ref[...] = ips.astype(out_ref.dtype)


def _augment_tables(params, dtype):
    """Fold the bias tables into the embedding tables:
         u_aug = [u_embed | u_bias | 1],  i_aug = [i_embed | 1 | i_bias]
       so  u_aug[u] . i_aug[i] = u_embed[u].i_embed[i] + u_bias[u] + i_bias[i]."""
    ue, ie = params["u_embed"], params["i_embed"]
    ub, ib = params["u_bias"], params["i_bias"]
    ones_u = jnp.ones((ue.shape[0], 1), ue.dtype)
    ones_i = jnp.ones((ie.shape[0], 1), ie.dtype)
    u_aug = jnp.concatenate([ue, ub, ones_u], axis=1).astype(dtype)
    i_aug = jnp.concatenate([ie, ones_i, ib], axis=1).astype(dtype)
    return u_aug, i_aug


def mf_forward(params, user, item, *, block_b=4096, table_dtype=None):
    """Pallas implementation of MFNet.forward(user, item)."""
    orig_shape = user.shape
    user = user.reshape(-1)
    item = item.reshape(-1)
    B = user.shape[0]
    F = params["u_embed"].shape[1]
    F_aug = F + 2
    if table_dtype is None:
        table_dtype = params["u_embed"].dtype

    lanes = 128
    itemsize = jnp.dtype(table_dtype).itemsize
    f_lanes = pl.cdiv(F_aug, lanes) * lanes      # lane-padded feature width in VMEM

    # --- batch tile sizing --------------------------------------------------
    # Resident VMEM per grid step: 2 inputs x 2 (double buffer) x [block_b, f_lanes]
    # tiles + 2 x [block_b, 1] (lane-padded) f32 output tiles.
    vmem_budget = 32 << 20
    per_row = 4 * f_lanes * itemsize + 2 * lanes * 4
    block_b = min(block_b, max(128, (vmem_budget // per_row) // 128 * 128))
    # Never larger than the (128-rounded) batch.
    block_b = max(128, min(block_b, pl.cdiv(B, 128) * 128))
    # v7x megacore: make sure the "parallel" grid axis has >= 2 blocks when the
    # batch is big enough for both TensorCores (and their HBM BW) to be used.
    if B > 256:
        half = max(128, pl.cdiv(pl.cdiv(B, 2), 128) * 128)
        block_b = min(block_b, half)

    n_blocks = pl.cdiv(B, block_b)
    B_pad = n_blocks * block_b
    pad = B_pad - B
    if pad:
        user = jnp.pad(user, (0, pad))   # index 0 is always a valid row
        item = jnp.pad(item, (0, pad))

    # --- gather (XLA glue): one row gather per side, no transpose ------------
    u_aug, i_aug = _augment_tables(params, table_dtype)
    uvec = jnp.take(u_aug, user, axis=0)          # [B_pad, F+2]
    ivec = jnp.take(i_aug, item, axis=0)          # [B_pad, F+2]

    in_tile = block_b * f_lanes * itemsize
    out_tile = block_b * lanes * 4
    vmem_limit = int(min(2 * 2 * in_tile + 2 * out_tile + (8 << 20), 112 << 20))
    cost = pl.CostEstimate(
        flops=2 * B_pad * F_aug,
        transcendentals=0,
        bytes_accessed=2 * B_pad * F_aug * itemsize + B_pad * 4,
    )

    score = pl.pallas_call(
        mf_score_kernel,
        out_shape=jax.ShapeDtypeStruct((B_pad, 1), jnp.float32),
        grid=(n_blocks,),
        in_specs=[
            pl.BlockSpec((block_b, F_aug), lambda i: (i, 0)),   # uvec block
            pl.BlockSpec((block_b, F_aug), lambda i: (i, 0)),   # ivec block
        ],
        out_specs=pl.BlockSpec((block_b, 1), lambda i: (i, 0)),
        compiler_params=pltpu.CompilerParams(
            dimension_semantics=("parallel",),       # shards across v7x's 2 TCs
            vmem_limit_bytes=vmem_limit),
        cost_estimate=cost,
    )(uvec, ivec)

    return score[:B, 0].reshape(orig_shape)


def init_params(key, n_users, n_items, n_feats):
    """Deterministic init matching MFNet.__init__:
       nn.Embedding default N(0,1), then *0.05, biases additionally squared."""
    k1, k2, k3, k4 = jax.random.split(key, 4)
    u_bias = jnp.square(jax.random.normal(k1, (n_users, 1), jnp.float32) * 0.05)
    i_bias = jnp.square(jax.random.normal(k2, (n_items, 1), jnp.float32) * 0.05)
    u_embed = jax.random.normal(k3, (n_users, n_feats), jnp.float32) * 0.05
    i_embed = jax.random.normal(k4, (n_items, n_feats), jnp.float32) * 0.05
    return {"u_bias": u_bias, "i_bias": i_bias,
            "u_embed": u_embed, "i_embed": i_embed}


def mf_forward_ref(params, user, item):
    """Pure-JAX reference of the PyTorch forward."""
    ub = params["u_bias"][user].reshape(user.shape)
    ib = params["i_bias"][item].reshape(item.shape)
    uvec = params["u_embed"][user]
    ivec = params["i_embed"][item]
    ips = jnp.sum(uvec * ivec, axis=-1)
    return ub + ib + ips


if __name__ == "__main__":
    n_users, n_items, n_feats = 50, 80, 32
    batch = 300  # deliberately not a multiple of 128: exercises the tail pad

    key = jax.random.PRNGKey(0)
    kp, ku, ki = jax.random.split(key, 3)

    params = init_params(kp, n_users, n_items, n_feats)
    user = jax.random.randint(ku, (batch,), 0, n_users, dtype=jnp.int32)
    item = jax.random.randint(ki, (batch,), 0, n_items, dtype=jnp.int32)

    score_ref = jax.block_until_ready(mf_forward_ref(params, user, item))

    # Multi-step grid + tail padding (3 blocks of 128), f32 tables.
    score_a = jax.block_until_ready(mf_forward(params, user, item, block_b=128))
    # Default tile sizing (auto-split into 2 blocks of 256 for the megacore axis).
    score_b = jax.block_until_ready(mf_forward(params, user, item))
    # bf16 gathered embeddings, f32 in-kernel accumulation (bandwidth lever).
    score_c = jax.block_until_ready(
        mf_forward(params, user, item, table_dtype=jnp.bfloat16))

    assert score_a.shape == user.shape, (score_a.shape, user.shape)
    assert score_b.shape == user.shape, (score_b.shape, user.shape)
    assert score_c.shape == user.shape, (score_c.shape, user.shape)
    assert jnp.allclose(score_a, score_ref, rtol=1e-5, atol=1e-6), "mismatch (block_b=128)"
    assert jnp.allclose(score_b, score_ref, rtol=1e-5, atol=1e-6), "mismatch (default block_b)"
    assert jnp.allclose(score_c, score_ref, rtol=5e-2, atol=2e-3), "mismatch (bf16 tables)"

    print("KERNEL_OK")
</pallas_src>

<mosaic_0001>
module attributes {stable_mosaic.version = 11 : i64} {
  func.func @mf_score_kernel(%arg0: i32, %arg1: memref<128x34xf32, #tpu.memory_space<vmem>>, %arg2: memref<128x34xf32, #tpu.memory_space<vmem>>, %arg3: memref<128x1xf32, #tpu.memory_space<vmem>>) attributes {dimension_semantics = [#tpu.dimension_semantics<parallel>], iteration_bounds = array<i64: 3>, scalar_prefetch = 0 : i64, scratch_operands = 0 : i64, tpu.core_type = #tpu.core_type<tc>, window_params = [{transform_indices = @transform_0, window_bounds = array<i64: 128, 34>}, {transform_indices = @transform_1, window_bounds = array<i64: 128, 34>}, {transform_indices = @transform_2, window_bounds = array<i64: 128, 1>}]} {
    %c0 = arith.constant 0 : index
    %c0_0 = arith.constant 0 : index
    %0 = vector.load %arg1[%c0, %c0_0] : memref<128x34xf32, #tpu.memory_space<vmem>>, vector<128x34xf32>
    %c0_1 = arith.constant 0 : index
    %c0_2 = arith.constant 0 : index
    %1 = vector.load %arg2[%c0_1, %c0_2] : memref<128x34xf32, #tpu.memory_space<vmem>>, vector<128x34xf32>
    %2 = arith.mulf %0, %1 : vector<128x34xf32>
    %cst = arith.constant dense<0.000000e+00> : vector<128xf32>
    %3 = vector.multi_reduction <add>, %2, %cst [1] : vector<128x34xf32> to vector<128xf32>
    %4 = vector.shape_cast %3 : vector<128xf32> to vector<128x1xf32>
    %c0_3 = arith.constant 0 : index
    %c0_4 = arith.constant 0 : index
    %5 = vector.load %arg3[%c0_3, %c0_4] : memref<128x1xf32, #tpu.memory_space<vmem>>, vector<128x1xf32>
    tpu.vector_store %arg3[%c0_3, %c0_4], %4 {strides = array<i32>} : memref<128x1xf32, #tpu.memory_space<vmem>>, vector<128x1xf32>,
    return
  }
  func.func @transform_0(%arg0: i32) -> (i32, i32) {
    %c0_i32 = arith.constant 0 : i32
    %c0_i32_0 = arith.constant 0 : i32
    return %arg0, %c0_i32 : i32, i32
  }
  func.func @transform_1(%arg0: i32) -> (i32, i32) {
    %c0_i32 = arith.constant 0 : i32
    %c0_i32_0 = arith.constant 0 : i32
    return %arg0, %c0_i32 : i32, i32
  }
  func.func @transform_2(%arg0: i32) -> (i32, i32) {
    %c0_i32 = arith.constant 0 : i32
    %c0_i32_0 = arith.constant 0 : i32
    return %arg0, %c0_i32 : i32, i32
  }
}

</mosaic_0001>

<llo_original>
// kernel: tpu_custom_call.1
$region0: #{tpu_custom_call.1}
  #allocation0 [shape = 'u32[]', space=smem, size = 0x4, offset = 0x4, fixed_abs, tag = 'smem constant byte address 0x4 - core index']
  #allocation1 [shape = 'u32[144,128]{1,0:T(1,128)}', space=vmem, size = 0x12000, scoped, tag = 'internal scratch']
  %s0 = inlined_call_operand.vmem [shape: f32[384,34], index: 0, kind: input, shape index: {}]
  %s1 = inlined_call_operand.vmem [shape: f32[384,34], index: 1, kind: input, shape index: {}]
  %s2 = inlined_call_operand.vmem [shape: f32[384,1], index: 2, kind: output, shape index: {}]
  %s3 = sld [smem:[#allocation0]]
  $region41: #{tpu_custom_call.1} parent=0
    _
  %s5 = ssub.s32 1, %s3
  %s6 = scalar_select 0, %s5, %s3
  loop: start=0, step=1, limit=5
  $region2: #{tpu_custom_call.1} parent=0 // loop_pre_header
    _
  $region3: #{tpu_custom_call.1} parent=0 // loop_header
    %s8 = sphi 0, %s12
    %p9 = scmp.ge.s32.totalorder %s8, 5
    %s18 = sphi 0, %s20
    %s21 = sphi 0, %s18
    %s22 = sphi 0, %s21
    %s38 = sphi 0, %s22
    %s44 = sphi 0, %s46
    %s47 = sphi 0, %s44
    %s48 = sphi 0, %s47
    %s64 = sphi 0, %s48
    %s70 = sphi 0, %s72
    %s73 = sphi 0, %s70
    %s74 = sphi 0, %s73
    %s90 = sphi 0, %s74
  $region4: #{tpu_custom_call.1} parent=0 // loop_header_branch
    %11 = sbr.rel (%p9) target = $region8
  $region5: #{tpu_custom_call.1} parent=0 // loop_body
    %s13 = ssub.s32 %s8, 1
    %s14 = ssub.s32 %s8, 2
    %s15 = sadd.s32 %s8, 1
    %s16 = ssub.s32 %s8, %s15
    %p17 = scmp.eq.s32.totalorder %s16, 0
    %s19 = sadd.s32 %s18, 1
    %s20 = scalar_select %p17, %s18, %s19
    %p23 = pneg %p17
    %p24 = scmp.eq.s32.totalorder %s8, 2
    %p25 = por %p23, %p24
    %p26 = scmp.ne.s32.totalorder %s18, %s21
    %p27 = scmp.eq.s32.totalorder %s8, 0
    %p28 = por %p26, %p27
    %p29 = scmp.ne.s32.totalorder %s18, %s21
    %p30 = scmp.eq.s32.totalorder %s13, 2
    %p31 = por %p29, %p30
    %p32 = scmp.ne.s32.totalorder %s21, %s22
    %p33 = scmp.eq.s32.totalorder %s13, 0
    %p34 = por %p32, %p33
    %p35 = scmp.ne.s32.totalorder %s21, %s22
    %p36 = scmp.eq.s32.totalorder %s14, 2
    %p37 = por %p35, %p36
    %p39 = scmp.ne.s32.totalorder %s22, %s38
    %p40 = scmp.eq.s32.totalorder %s14, 0
    %p41 = por %p39, %p40
    %s42 = ssub.s32 %s8, %s15
    %p43 = scmp.eq.s32.totalorder %s42, 0
    %s45 = sadd.s32 %s44, 1
    %s46 = scalar_select %p43, %s44, %s45
    %p49 = pneg %p43
    %p50 = scmp.eq.s32.totalorder %s8, 2
    %p51 = por %p49, %p50
    %p52 = scmp.ne.s32.totalorder %s44, %s47
    %p53 = scmp.eq.s32.totalorder %s8, 0
    %p54 = por %p52, %p53
    %p55 = scmp.ne.s32.totalorder %s44, %s47
    %p56 = scmp.eq.s32.totalorder %s13, 2
    %p57 = por %p55, %p56
    %p58 = scmp.ne.s32.totalorder %s47, %s48
    %p59 = scmp.eq.s32.totalorder %s13, 0
    %p60 = por %p58, %p59
    %p61 = scmp.ne.s32.totalorder %s47, %s48
    %p62 = scmp.eq.s32.totalorder %s14, 2
    %p63 = por %p61, %p62
    %p65 = scmp.ne.s32.totalorder %s48, %s64
    %p66 = scmp.eq.s32.totalorder %s14, 0
    %p67 = por %p65, %p66
    %s68 = ssub.s32 %s8, %s15
    %p69 = scmp.eq.s32.totalorder %s68, 0
    %s71 = sadd.s32 %s70, 1
    %s72 = scalar_select %p69, %s70, %s71
    %p75 = pneg %p69
    %p76 = scmp.eq.s32.totalorder %s8, 2
    %p77 = por %p75, %p76
    %p78 = scmp.ne.s32.totalorder %s70, %s73
    %p79 = scmp.eq.s32.totalorder %s8, 0
    %p80 = por %p78, %p79
    %p81 = scmp.ne.s32.totalorder %s70, %s73
    %p82 = scmp.eq.s32.totalorder %s13, 2
    %p83 = por %p81, %p82
    %p84 = scmp.ne.s32.totalorder %s73, %s74
    %p85 = scmp.eq.s32.totalorder %s13, 0
    %p86 = por %p84, %p85
    %p87 = scmp.ne.s32.totalorder %s73, %s74
    %p88 = scmp.eq.s32.totalorder %s14, 2
    %p89 = por %p87, %p88
    %p91 = scmp.ne.s32.totalorder %s74, %s90
    %p92 = scmp.eq.s32.totalorder %s14, 0
    %p93 = por %p91, %p92
    %p94 = scmp.le.s32.totalorder 1, %s8
    %p95 = scmp.lt.s32.totalorder %s8, 4
    %p96 = pnand %p94, %p95
    %p97 = pneg %p96
    // Predicated region
    $region9: #{tpu_custom_call.1} parent=5 // pred_check
      _
    $region10: #{tpu_custom_call.1} parent=5 // pred_check_branch
      %99 = sbr.rel (%p96) target = $region12
    $region11: #{tpu_custom_call.1} parent=5 // pred_region
      %s100 = ssub.s32 %s8, 1
    $region12: #{tpu_custom_call.1} parent=5 // pred_fallthru
      _
    %p101 = scmp.lt.s32.totalorder %s8, 3
    // Predicated region
    $region13: #{tpu_custom_call.1} parent=5 // pred_check
      %p102 = pneg %p101
    $region14: #{tpu_custom_call.1} parent=5 // pred_check_branch
      %104 = sbr.rel (%p102) target = $region16
    $region15: #{tpu_custom_call.1} parent=5 // pred_region
      // Predicated region
      $region17: #{tpu_custom_call.1} parent=15 // pred_check
        %p105 = pneg %p28
      $region18: #{tpu_custom_call.1} parent=15 // pred_check_branch
        %107 = sbr.rel (%p105) target = $region20
      $region19: #{tpu_custom_call.1} parent=15 // pred_region
        %s108 = smul.u32 16, %s8
        %p109 = scmp.lt.s32.totalorder %s108, 47
        %s110 = scalar_select %p109, %s108, 47
        %s111 = smul.addr %s110, 8
        %s112 = scalar_lea.vmem %s0, %s111
        %s113 = smul.u32 16, %s8
      $region20: #{tpu_custom_call.1} parent=15 // pred_fallthru
        _
      // Predicated region
      $region21: #{tpu_custom_call.1} parent=15 // pred_check
        %p114 = pneg %p54
      $region22: #{tpu_custom_call.1} parent=15 // pred_check_branch
        %116 = sbr.rel (%p114) target = $region24
      $region23: #{tpu_custom_call.1} parent=15 // pred_region
        %s117 = smul.u32 16, %s8
        %p118 = scmp.lt.s32.totalorder %s117, 47
        %s119 = scalar_select %p118, %s117, 47
        %s120 = smul.addr %s119, 8
        %s121 = scalar_lea.vmem %s1, %s120
        %s122 = smul.u32 16, %s8
      $region24: #{tpu_custom_call.1} parent=15 // pred_fallthru
        _
    $region16: #{tpu_custom_call.1} parent=5 // pred_fallthru
      _
    %p123 = scmp.le.s32.totalorder 1, %s8
    %p124 = scmp.lt.s32.totalorder %s8, 4
    %p125 = pnand %p123, %p124
    %p126 = pneg %p125
    // Predicated region
    $region25: #{tpu_custom_call.1} parent=5 // pred_check
      _
    $region26: #{tpu_custom_call.1} parent=5 // pred_check_branch
      %128 = sbr.rel (%p125) target = $region28
    $region27: #{tpu_custom_call.1} parent=5 // pred_region
      %s129 = ssub.s32 %s8, 1
      %s130 = smul.u32 16, %s13
      %p131 = scmp.lt.s32.totalorder %s130, 47
      %s132 = scalar_select %p131, %s130, 47
      %s133 = smul.addr %s132, 8
      %s134 = scalar_lea.vmem %s0, %s133
      %p135 = pneg %p34
      %p136 = pneg %p31
      %s137 = smul.u32 16, %s13
      %p138 = scmp.lt.s32.totalorder %s137, 47
      %s139 = scalar_select %p138, %s137, 47
      %s140 = smul.addr %s139, 8
      %s141 = scalar_lea.vmem %s1, %s140
      %p142 = pneg %p60
      %p143 = pneg %p57
      %p144 = pneg %p86
      %p145 = pneg %p83
      %s146 = smul.u32 16, %s13
      %p147 = scmp.lt.s32.totalorder %s146, 47
      %s148 = scalar_select %p147, %s146, 47
      %s149 = smul.addr %s148, 8
      %s150 = scalar_lea.vmem %s2, %s149
      %s151 = smul.u32 16, %s13
      %p152 = scmp.lt.s32.totalorder %s151, 47
      %s153 = scalar_select %p152, %s151, 47
      %s154 = smul.addr %s153, 8
      %s155 = scalar_lea.vmem %s0, %s154
      %s156 = smul.u32 16, %s13
      %s157 = smul.u32 16, %s13
      %p158 = scmp.lt.s32.totalorder %s157, 47
      %s159 = scalar_select %p158, %s157, 47
      %s160 = smul.addr %s159, 8
      %s161 = scalar_lea.vmem %s1, %s160
      %s162 = smul.u32 16, %s13
      %s163 = smul.u32 16, %s13
      %p164 = scmp.lt.s32.totalorder %s163, 47
      %s165 = scalar_select %p164, %s163, 47
      %s166 = smul.addr %s165, 8
      %s167 = scalar_lea.vmem %s2, %s166
      %s168 = smul.u32 16, %s13
      %v169 = vld [vmem:[%s155] sm:$0xff]
      %v170 = vld [vmem:[%s155 + $0x8] sm:$0xff]
      %v171 = vld [vmem:[%s155 + $0x10] sm:$0xff]
      %v172 = vld [vmem:[%s155 + $0x18] sm:$0xff]
      %v173 = vld [vmem:[%s155 + $0x20] sm:$0xff]
      %v174 = vld [vmem:[%s155 + $0x28] sm:$0xff]
      %v175 = vld [vmem:[%s155 + $0x30] sm:$0xff]
      %v176 = vld [vmem:[%s155 + $0x38] sm:$0xff]
      %v177 = vld [vmem:[%s155 + $0x40] sm:$0xff]
      %v178 = vld [vmem:[%s155 + $0x48] sm:$0xff]
      %v179 = vld [vmem:[%s155 + $0x50] sm:$0xff]
      %v180 = vld [vmem:[%s155 + $0x58] sm:$0xff]
      %v181 = vld [vmem:[%s155 + $0x60] sm:$0xff]
      %v182 = vld [vmem:[%s155 + $0x68] sm:$0xff]
      %v183 = vld [vmem:[%s155 + $0x70] sm:$0xff]
      %v184 = vld [vmem:[%s155 + $0x78] sm:$0xff]
      %v185 = vld [vmem:[%s161] sm:$0xff]
      %v186 = vld [vmem:[%s161 + $0x8] sm:$0xff]
      %v187 = vld [vmem:[%s161 + $0x10] sm:$0xff]
      %v188 = vld [vmem:[%s161 + $0x18] sm:$0xff]
      %v189 = vld [vmem:[%s161 + $0x20] sm:$0xff]
      %v190 = vld [vmem:[%s161 + $0x28] sm:$0xff]
      %v191 = vld [vmem:[%s161 + $0x30] sm:$0xff]
      %v192 = vld [vmem:[%s161 + $0x38] sm:$0xff]
      %v193 = vld [vmem:[%s161 + $0x40] sm:$0xff]
      %v194 = vld [vmem:[%s161 + $0x48] sm:$0xff]
      %v195 = vld [vmem:[%s161 + $0x50] sm:$0xff]
      %v196 = vld [vmem:[%s161 + $0x58] sm:$0xff]
      %v197 = vld [vmem:[%s161 + $0x60] sm:$0xff]
      %v198 = vld [vmem:[%s161 + $0x68] sm:$0xff]
      %v199 = vld [vmem:[%s161 + $0x70] sm:$0xff]
      %v200 = vld [vmem:[%s161 + $0x78] sm:$0xff]
      %v201 = vmul.f32 %v169, %v185
      %v202 = vmul.f32 %v170, %v186
      %v203 = vmul.f32 %v171, %v187
      %v204 = vmul.f32 %v172, %v188
      %v205 = vmul.f32 %v173, %v189
      %v206 = vmul.f32 %v174, %v190
      %v207 = vmul.f32 %v175, %v191
      %v208 = vmul.f32 %v176, %v192
      %v209 = vmul.f32 %v177, %v193
      %v210 = vmul.f32 %v178, %v194
      %v211 = vmul.f32 %v179, %v195
      %v212 = vmul.f32 %v180, %v196
      %v213 = vmul.f32 %v181, %v197
      %v214 = vmul.f32 %v182, %v198
      %v215 = vmul.f32 %v183, %v199
      %v216 = vmul.f32 %v184, %v200
      %vm217 = vcmask 277504
      %v218 = vsel %vm217, %v201, 0.0
      %219 = vadd.xlane.f32.xlu0 %v218
      %v220 = vpop.xlane.xlu0 %219
      %v221 = vsel %vm217, %v202, 0.0
      %222 = vadd.xlane.f32.xlu0 %v221
      %v223 = vpop.xlane.xlu0 %222
      %v224 = vsel %vm217, %v203, 0.0
      %225 = vadd.xlane.f32.xlu0 %v224
      %v226 = vpop.xlane.xlu0 %225
      %v227 = vsel %vm217, %v204, 0.0
      %228 = vadd.xlane.f32.xlu0 %v227
      %v229 = vpop.xlane.xlu0 %228
      %v230 = vsel %vm217, %v205, 0.0
      %231 = vadd.xlane.f32.xlu0 %v230
      %v232 = vpop.xlane.xlu0 %231
      %v233 = vsel %vm217, %v206, 0.0
      %234 = vadd.xlane.f32.xlu0 %v233
      %v235 = vpop.xlane.xlu0 %234
      %v236 = vsel %vm217, %v207, 0.0
      %237 = vadd.xlane.f32.xlu0 %v236
      %v238 = vpop.xlane.xlu0 %237
      %v239 = vsel %vm217, %v208, 0.0
      %240 = vadd.xlane.f32.xlu0 %v239
      %v241 = vpop.xlane.xlu0 %240
      %v242 = vsel %vm217, %v209, 0.0
      %243 = vadd.xlane.f32.xlu0 %v242
      %v244 = vpop.xlane.xlu0 %243
      %v245 = vsel %vm217, %v210, 0.0
      %246 = vadd.xlane.f32.xlu0 %v245
      %v247 = vpop.xlane.xlu0 %246
      %v248 = vsel %vm217, %v211, 0.0
      %249 = vadd.xlane.f32.xlu0 %v248
      %v250 = vpop.xlane.xlu0 %249
      %v251 = vsel %vm217, %v212, 0.0
      %252 = vadd.xlane.f32.xlu0 %v251
      %v253 = vpop.xlane.xlu0 %252
      %v254 = vsel %vm217, %v213, 0.0
      %255 = vadd.xlane.f32.xlu0 %v254
      %v256 = vpop.xlane.xlu0 %255
      %v257 = vsel %vm217, %v214, 0.0
      %258 = vadd.xlane.f32.xlu0 %v257
      %v259 = vpop.xlane.xlu0 %258
      %v260 = vsel %vm217, %v215, 0.0
      %261 = vadd.xlane.f32.xlu0 %v260
      %v262 = vpop.xlane.xlu0 %261
      %v263 = vsel %vm217, %v216, 0.0
      %264 = vadd.xlane.f32.xlu0 %v263
      %v265 = vpop.xlane.xlu0 %264
      %vm266 = vcmask 7168
      %267 = vst.msk [vmem:[%s167] sm:$0xff] %vm266, %v220
      %268 = vst.msk [vmem:[%s167 + $0x8] sm:$0xff] %vm266, %v223
      %269 = vst.msk [vmem:[%s167 + $0x10] sm:$0xff] %vm266, %v226
      %270 = vst.msk [vmem:[%s167 + $0x18] sm:$0xff] %vm266, %v229
      %271 = vst.msk [vmem:[%s167 + $0x20] sm:$0xff] %vm266, %v232
      %272 = vst.msk [vmem:[%s167 + $0x28] sm:$0xff] %vm266, %v235
      %273 = vst.msk [vmem:[%s167 + $0x30] sm:$0xff] %vm266, %v238
      %274 = vst.msk [vmem:[%s167 + $0x38] sm:$0xff] %vm266, %v241
      %275 = vst.msk [vmem:[%s167 + $0x40] sm:$0xff] %vm266, %v244
      %276 = vst.msk [vmem:[%s167 + $0x48] sm:$0xff] %vm266, %v247
      %277 = vst.msk [vmem:[%s167 + $0x50] sm:$0xff] %vm266, %v250
      %278 = vst.msk [vmem:[%s167 + $0x58] sm:$0xff] %vm266, %v253
      %279 = vst.msk [vmem:[%s167 + $0x60] sm:$0xff] %vm266, %v256
      %280 = vst.msk [vmem:[%s167 + $0x68] sm:$0xff] %vm266, %v259
      %281 = vst.msk [vmem:[%s167 + $0x70] sm:$0xff] %vm266, %v262
      %282 = vst.msk [vmem:[%s167 + $0x78] sm:$0xff] %vm266, %v265
      %s283 = smul.u32 16, %s13
      %p284 = scmp.lt.s32.totalorder %s283, 47
      %s285 = scalar_select %p284, %s283, 47
      %s286 = smul.addr %s285, 8
      %s287 = scalar_lea.vmem %s2, %s286
      // Predicated region
      $region29: #{tpu_custom_call.1} parent=27 // pred_check
        %p288 = pneg %p83
      $region30: #{tpu_custom_call.1} parent=27 // pred_check_branch
        %290 = sbr.rel (%p288) target = $region32
      $region31: #{tpu_custom_call.1} parent=27 // pred_region
        %s291 = smul.u32 16, %s13
      $region32: #{tpu_custom_call.1} parent=27 // pred_fallthru
        _
    $region28: #{tpu_custom_call.1} parent=5 // pred_fallthru
      _
    %p292 = scmp.le.s32.totalorder 2, %s8
    // Predicated region
    $region33: #{tpu_custom_call.1} parent=5 // pred_check
      %p293 = pneg %p292
    $region34: #{tpu_custom_call.1} parent=5 // pred_check_branch
      %295 = sbr.rel (%p293) target = $region36
    $region35: #{tpu_custom_call.1} parent=5 // pred_region
      %s296 = ssub.s32 %s8, 2
      // Predicated region
      $region37: #{tpu_custom_call.1} parent=35 // pred_check
        %p297 = pneg %p89
      $region38: #{tpu_custom_call.1} parent=35 // pred_check_branch
        %299 = sbr.rel (%p297) target = $region40
      $region39: #{tpu_custom_call.1} parent=35 // pred_region
        %s300 = smul.u32 16, %s14
        %p301 = scmp.lt.s32.totalorder %s300, 47
        %s302 = scalar_select %p301, %s300, 47
        %s303 = smul.addr %s302, 8
        %s304 = scalar_lea.vmem %s2, %s303
      $region40: #{tpu_custom_call.1} parent=35 // pred_fallthru
        _
    $region36: #{tpu_custom_call.1} parent=5 // pred_fallthru
      _
  $region6: #{tpu_custom_call.1} parent=0 // loop_footer
    %s12 = sadd.s32 1, %s8
  $region7: #{tpu_custom_call.1} parent=0 // loop_footer_branch
    %7 = sbr.rel target = $region3
  $region8: #{tpu_custom_call.1} parent=0 // loop_exit
    _

</llo_original>
